<compile_context>
chip_gen: v7x
topology: tpu7x:2x2x1
jax: 0.10.0
libtpu: 0.0.40
codegen_flags: <defaults>
</compile_context>

<pallas_src>
import functools

import jax
import jax.numpy as jnp
import numpy as np
from jax.experimental import pallas as pl
from jax.experimental.pallas import tpu as pltpu

_MASK_NEG = 1e30  # finite "minus infinity" for the key-padding mask


def _pick_tile(dim, candidates):
    """Largest candidate tile that evenly divides dim, else the full dim."""
    for c in candidates:
        if c <= dim and dim % c == 0:
            return c
    return dim


# ----------------------------- linear (x @ W + b) ---------------------------

def _linear_kernel(x_ref, w_ref, b_ref, o_ref, acc_ref):
    # grid = (M/tm, N/tn, K/tk); K is the reduction ("arbitrary") axis.
    @pl.when(pl.program_id(2) == 0)
    def _init():
        acc_ref[...] = jnp.zeros_like(acc_ref)

    acc_ref[...] += jnp.dot(x_ref[...], w_ref[...],
                            preferred_element_type=jnp.float32)

    @pl.when(pl.program_id(2) == pl.num_programs(2) - 1)
    def _finalize():
        o_ref[...] = (acc_ref[...] + b_ref[...].astype(jnp.float32)
                      ).astype(o_ref.dtype)


def linear(x, w, b, out_dtype=jnp.float32):
    """x: (M, K), w: (K, N), b: (N,) -> (M, N) out_dtype; tiled matmul,
    f32 accumulation in VMEM."""
    M, K = x.shape
    K2, N = w.shape
    assert K == K2
    tm = _pick_tile(M, (256, 128, 64, 32, 16, 8))
    tn = _pick_tile(N, (512, 256, 128))
    tk = _pick_tile(K, (512, 256, 128))
    grid = (M // tm, N // tn, K // tk)
    return pl.pallas_call(
        _linear_kernel,
        out_shape=jax.ShapeDtypeStruct((M, N), out_dtype),
        grid=grid,
        in_specs=[
            pl.BlockSpec((tm, tk), lambda i, j, k: (i, k)),
            pl.BlockSpec((tk, tn), lambda i, j, k: (k, j)),
            pl.BlockSpec((1, tn), lambda i, j, k: (0, j)),
        ],
        out_specs=pl.BlockSpec((tm, tn), lambda i, j, k: (i, j)),
        scratch_shapes=[pltpu.VMEM((tm, tn), jnp.float32)],
        compiler_params=pltpu.CompilerParams(
            dimension_semantics=("parallel", "parallel", "arbitrary")),
    )(x, w, b.reshape(1, N))


# --------------------------- fused multi-head attention ---------------------

def _mha_kernel(*refs, num_heads, head_dim, has_mask, has_bias):
    it = iter(refs)
    q_ref = next(it)                       # (1, H, tq, D)
    k_ref = next(it)                       # (1, H, ts, D)
    v_ref = next(it)                       # (1, H, ts, D)
    mask_ref = next(it) if has_mask else None   # (1, 1, ts) additive f32
    bias_ref = next(it) if has_bias else None   # (1, H, tq, ts)
    o_ref = next(it)                       # (1, tq, E) lane-dense output
    m_scr = next(it)                       # (H, tq, 1) running max
    l_scr = next(it)                       # (H, tq, 1) running denom
    acc_scr = next(it)                     # (H, tq, D) running PV accumulator

    si = pl.program_id(2)

    @pl.when(si == 0)
    def _init():
        m_scr[...] = jnp.full_like(m_scr, -jnp.inf)
        l_scr[...] = jnp.zeros_like(l_scr)
        acc_scr[...] = jnp.zeros_like(acc_scr)

    q = q_ref[0]                           # (H, tq, D)
    k = k_ref[0]                           # (H, ts, D)
    v = v_ref[0]                           # (H, ts, D)

    # Batched-over-heads QK^T, contracting the last dims (no explicit k.T).
    s = jax.lax.dot_general(
        q, k,
        dimension_numbers=(((2,), (2,)), ((0,), (0,))),
        preferred_element_type=jnp.float32)            # (H, tq, ts) f32

    if has_mask:
        # Additive mask (already -1e30 on padded keys, 0 elsewhere).
        s = s + mask_ref[0]
    if has_bias:
        s = s + bias_ref[0].astype(jnp.float32)

    # Online softmax update (f32).
    m_prev = m_scr[...]
    m_new = jnp.maximum(m_prev, jnp.max(s, axis=-1, keepdims=True))
    alpha = jnp.exp(m_prev - m_new)
    p = jnp.exp(s - m_new)                              # (H, tq, ts)
    l_scr[...] = alpha * l_scr[...] + jnp.sum(p, axis=-1, keepdims=True)
    pv = jax.lax.dot_general(
        p.astype(v.dtype), v,
        dimension_numbers=(((2,), (1,)), ((0,), (0,))),
        preferred_element_type=jnp.float32)             # (H, tq, D)
    acc_scr[...] = alpha * acc_scr[...] + pv
    m_scr[...] = m_new

    @pl.when(si == pl.num_programs(2) - 1)
    def _finalize():
        inv_l = pl.reciprocal(l_scr[...], approx=True)  # EUP reciprocal
        out = acc_scr[...] * inv_l                      # (H, tq, D) f32
        # Lane-dense (tq, E) writeback: per-head static lane slices into the
        # VMEM output block; the HBM store is a dense (tq, E) tile.
        for h in range(num_heads):
            o_ref[0, :, h * head_dim:(h + 1) * head_dim] = (
                out[h].astype(o_ref.dtype))


def attention(q, k, v, key_padding_mask=None, attn_bias=None):
    """q/k/v: (B, H, T, D); mask: (B, S) with 1.0 == padded; bias: (B*H, T, S).

    Returns (B, T, E) in q.dtype (lane-dense, ready for the output projection).
    Softmax scale is assumed to be already folded into q.
    """
    B, H, T, D = q.shape
    S = k.shape[2]
    E = H * D

    tq = _pick_tile(T, (256, 128, 64, 32, 16, 8))
    ts = _pick_tile(S, (512, 256, 128))
    grid = (B, T // tq, S // ts)

    has_mask = key_padding_mask is not None
    has_bias = attn_bias is not None

    args = [q, k, v]
    in_specs = [
        pl.BlockSpec((1, H, tq, D), lambda b, ti, si: (b, 0, ti, 0)),
        pl.BlockSpec((1, H, ts, D), lambda b, ti, si: (b, 0, si, 0)),
        pl.BlockSpec((1, H, ts, D), lambda b, ti, si: (b, 0, si, 0)),
    ]
    if has_mask:
        # Convert to an additive bias ONCE here: -1e30 on padded keys.
        mask_add = (key_padding_mask.astype(jnp.float32)
                    * jnp.float32(-_MASK_NEG)).reshape(B, 1, S)
        args.append(mask_add)
        in_specs.append(pl.BlockSpec((1, 1, ts), lambda b, ti, si: (b, 0, si)))
    if has_bias:
        args.append(attn_bias.reshape(B, H, T, S).astype(q.dtype))
        in_specs.append(
            pl.BlockSpec((1, H, tq, ts), lambda b, ti, si: (b, 0, ti, si)))

    kernel = functools.partial(_mha_kernel, num_heads=H, head_dim=D,
                               has_mask=has_mask, has_bias=has_bias)
    return pl.pallas_call(
        kernel,
        out_shape=jax.ShapeDtypeStruct((B, T, E), q.dtype),
        grid=grid,
        in_specs=in_specs,
        out_specs=pl.BlockSpec((1, tq, E), lambda b, ti, si: (b, ti, 0)),
        scratch_shapes=[
            pltpu.VMEM((H, tq, 1), jnp.float32),   # running max
            pltpu.VMEM((H, tq, 1), jnp.float32),   # running denominator
            pltpu.VMEM((H, tq, D), jnp.float32),   # PV accumulator
        ],
        compiler_params=pltpu.CompilerParams(
            dimension_semantics=("parallel", "parallel", "arbitrary")),
    )(*args)


# ------------------------------- module port --------------------------------

class SelfMultiheadAttentionAugPallas:
    """JAX/Pallas port of SelfMultiheadAttentionAug (inference path)."""

    def __init__(self, embed_dim, num_heads, key, dropout=0.1, bias=True,
                 scaling_factor=1, compute_dtype=jnp.float32):
        assert embed_dim % num_heads == 0
        self.embed_dim = embed_dim
        self.num_heads = num_heads
        self.head_dim = embed_dim // num_heads
        self.scaling = float((self.head_dim * scaling_factor) ** (-0.5))
        self.compute_dtype = compute_dtype

        k1, k2, k3, k4 = jax.random.split(key, 4)
        lim_in = 1.0 / np.sqrt(embed_dim)
        # f32 master params (nn.Linear layout), kept for the reference path.
        self.w_in = jax.random.uniform(k1, (3 * embed_dim, embed_dim),
                                       jnp.float32, -lim_in, lim_in)
        self.b_in = jax.random.uniform(k2, (3 * embed_dim,),
                                       jnp.float32, -lim_in, lim_in)
        self.w_out = jax.random.uniform(k3, (embed_dim, embed_dim),
                                        jnp.float32, -lim_in, lim_in)
        self.b_out = jax.random.uniform(k4, (embed_dim,),
                                        jnp.float32, -lim_in, lim_in)

        # Fold the softmax scale into the Q rows of in_proj and pre-transpose
        # the weights ONCE at init (no per-call .T / no per-step q*scale).
        w_in_folded = self.w_in.at[:embed_dim].multiply(self.scaling)
        b_in_folded = self.b_in.at[:embed_dim].multiply(self.scaling)
        self.w_in_t = jnp.asarray(w_in_folded.T, compute_dtype)    # (E, 3E)
        self.b_in_f = jnp.asarray(b_in_folded, jnp.float32)        # (3E,)
        self.w_out_t = jnp.asarray(self.w_out.T, compute_dtype)    # (E, E)

    def __call__(self, query, key_padding_mask=None, attn_bias=None):
        B, T, E = query.shape
        H, D = self.num_heads, self.head_dim
        assert E == self.embed_dim

        # in_proj (tiled Pallas matmul), output stored in compute dtype.
        # Softmax scale already folded into the Q weights.
        x2d = query.reshape(B * T, E).astype(self.compute_dtype)
        qkv = linear(x2d, self.w_in_t, self.b_in_f,
                     out_dtype=self.compute_dtype)            # (B*T, 3E)

        # (B*T, 3E) -> (3, B, H, T, D); single XLA transpose before attention.
        qkv = qkv.reshape(B, T, 3, H, D).transpose(2, 0, 3, 1, 4)
        q, k, v = qkv[0], qkv[1], qkv[2]

        # Fused flash-style attention; bias/mask-free variants skip those DMAs.
        o = attention(q, k, v, key_padding_mask=key_padding_mask,
                      attn_bias=attn_bias)           # (B, T, E) compute dtype

        # out_proj (tiled Pallas matmul); attention output is already
        # lane-dense (B, T, E), no transpose needed. Final result is f32.
        out = linear(o.reshape(B * T, E).astype(self.compute_dtype),
                     self.w_out_t, self.b_out, out_dtype=jnp.float32)
        return out.reshape(B, T, E)

    # plain-JAX reference (mirrors the PyTorch math) for verification
    def reference(self, query, key_padding_mask=None, attn_bias=None):
        B, T, E = query.shape
        H, D = self.num_heads, self.head_dim
        qkv = query.reshape(B * T, E) @ self.w_in.T + self.b_in
        q, k, v = jnp.split(qkv.reshape(B, T, 3 * E), 3, axis=-1)

        def to_heads(t):
            return (t.reshape(B, T, H, D).transpose(0, 2, 1, 3)
                     .reshape(B * H, T, D))
        q = to_heads(q) * self.scaling
        k, v = to_heads(k), to_heads(v)
        S = k.shape[1]
        w = jnp.einsum("btd,bsd->bts", q, k)
        if key_padding_mask is not None:
            w = w.reshape(B, H, T, S)
            w = jnp.where(key_padding_mask[:, None, None, :].astype(bool),
                          -jnp.inf, w)
            w = w.reshape(B * H, T, S)
        if attn_bias is not None:
            w = w + attn_bias
        a = jax.nn.softmax(w, axis=-1)
        o = jnp.einsum("bts,bsd->btd", a, v)
        o = o.reshape(B, H, T, D).transpose(0, 2, 1, 3).reshape(B, T, E)
        return (o.reshape(B * T, E) @ self.w_out.T + self.b_out).reshape(B, T, E)


if __name__ == "__main__":
    key = jax.random.PRNGKey(0)
    k_param, k_x, k_bias, k_mask = jax.random.split(key, 4)

    B, T, E, H = 2, 8, 32, 4
    x = jax.random.normal(k_x, (B, T, E), jnp.float32)
    attn_bias = 0.1 * jax.random.normal(k_bias, (B * H, T, T), jnp.float32)
    # pad the last two keys of batch 1, none of batch 0
    key_padding_mask = jnp.zeros((B, T), jnp.float32).at[1, -2:].set(1.0)

    # f32 compute path: masked + biased
    module = SelfMultiheadAttentionAugPallas(E, H, k_param)
    out = jax.block_until_ready(
        module(x, key_padding_mask=key_padding_mask, attn_bias=attn_bias))
    ref = module.reference(x, key_padding_mask=key_padding_mask,
                           attn_bias=attn_bias)
    np.testing.assert_allclose(np.asarray(out), np.asarray(ref),
                               rtol=2e-3, atol=2e-3)

    # f32 compute path: no mask / no bias (exercises the bias-free variant,
    # which skips the dense-zero-bias DMA entirely)
    out_nb = jax.block_until_ready(module(x))
    ref_nb = module.reference(x)
    np.testing.assert_allclose(np.asarray(out_nb), np.asarray(ref_nb),
                               rtol=2e-3, atol=2e-3)

    # bf16 compute path (production config for v6e/v7x MXU), f32 accumulation
    module_bf16 = SelfMultiheadAttentionAugPallas(
        E, H, k_param, compute_dtype=jnp.bfloat16)
    out_bf = jax.block_until_ready(
        module_bf16(x, key_padding_mask=key_padding_mask, attn_bias=attn_bias))
    np.testing.assert_allclose(np.asarray(out_bf), np.asarray(ref),
                               rtol=6e-2, atol=6e-2)

    print("KERNEL_OK")
</pallas_src>

<mosaic_0001>
module attributes {stable_mosaic.version = 11 : i64} {
  func.func @_linear_kernel(%arg0: i32, %arg1: i32, %arg2: i32, %arg3: memref<16x32xf32, #tpu.memory_space<vmem>>, %arg4: memref<32x96xf32, #tpu.memory_space<vmem>>, %arg5: memref<1x96xf32, #tpu.memory_space<vmem>>, %arg6: memref<16x96xf32, #tpu.memory_space<vmem>>, %arg7: memref<16x96xf32, #tpu.memory_space<vmem>>) attributes {dimension_semantics = [#tpu.dimension_semantics<parallel>, #tpu.dimension_semantics<parallel>, #tpu.dimension_semantics<arbitrary>], iteration_bounds = array<i64: 1, 1, 1>, scalar_prefetch = 0 : i64, scratch_operands = 1 : i64, tpu.core_type = #tpu.core_type<tc>, window_params = [{transform_indices = @transform_0, window_bounds = array<i64: 16, 32>}, {transform_indices = @transform_1, window_bounds = array<i64: 32, 96>}, {transform_indices = @transform_2, window_bounds = array<i64: 1, 96>}, {transform_indices = @transform_3, window_bounds = array<i64: 16, 96>}]} {
    %c0_i32 = arith.constant 0 : i32
    %0 = arith.cmpi eq, %arg2, %c0_i32 : i32
    %1 = arith.extui %0 : i1 to i32
    %c0_i32_0 = arith.constant 0 : i32
    %2 = arith.cmpi ne, %1, %c0_i32_0 : i32
    scf.if %2 {
      %cst_10 = arith.constant 0.000000e+00 : f32
      %12 = vector.broadcast %cst_10 : f32 to vector<16x96xf32>
      %c0_11 = arith.constant 0 : index
      %c0_12 = arith.constant 0 : index
      %13 = vector.load %arg7[%c0_11, %c0_12] : memref<16x96xf32, #tpu.memory_space<vmem>>, vector<16x96xf32>
      tpu.vector_store %arg7[%c0_11, %c0_12], %12 {strides = array<i32>} : memref<16x96xf32, #tpu.memory_space<vmem>>, vector<16x96xf32>,
    } else {
    }
    %c0 = arith.constant 0 : index
    %c0_1 = arith.constant 0 : index
    %3 = vector.load %arg7[%c0, %c0_1] : memref<16x96xf32, #tpu.memory_space<vmem>>, vector<16x96xf32>
    %c0_2 = arith.constant 0 : index
    %c0_3 = arith.constant 0 : index
    %4 = vector.load %arg3[%c0_2, %c0_3] : memref<16x32xf32, #tpu.memory_space<vmem>>, vector<16x32xf32>
    %c0_4 = arith.constant 0 : index
    %c0_5 = arith.constant 0 : index
    %5 = vector.load %arg4[%c0_4, %c0_5] : memref<32x96xf32, #tpu.memory_space<vmem>>, vector<32x96xf32>
    %cst = arith.constant dense<0.000000e+00> : vector<16x96xf32>
    %6 = tpu.matmul %4, %5, %cst {dimension_numbers = #tpu.dot_dimension_numbers<[1], [0], [0], [1], [0, 0, 1, 1], [], []>} : vector<16x32xf32>, vector<32x96xf32>, vector<16x96xf32> -> vector<16x96xf32>
    %7 = arith.addf %3, %6 : vector<16x96xf32>
    %c0_6 = arith.constant 0 : index
    %c0_7 = arith.constant 0 : index
    %8 = vector.load %arg7[%c0_6, %c0_7] : memref<16x96xf32, #tpu.memory_space<vmem>>, vector<16x96xf32>
    tpu.vector_store %arg7[%c0_6, %c0_7], %7 {strides = array<i32>} : memref<16x96xf32, #tpu.memory_space<vmem>>, vector<16x96xf32>,
    %c0_i32_8 = arith.constant 0 : i32
    %9 = arith.cmpi eq, %arg2, %c0_i32_8 : i32
    %10 = arith.extui %9 : i1 to i32
    %c0_i32_9 = arith.constant 0 : i32
    %11 = arith.cmpi ne, %10, %c0_i32_9 : i32
    scf.if %11 {
      %c0_10 = arith.constant 0 : index
      %c0_11 = arith.constant 0 : index
      %12 = vector.load %arg7[%c0_10, %c0_11] : memref<16x96xf32, #tpu.memory_space<vmem>>, vector<16x96xf32>
      %c0_12 = arith.constant 0 : index
      %c0_13 = arith.constant 0 : index
      %13 = vector.load %arg5[%c0_12, %c0_13] : memref<1x96xf32, #tpu.memory_space<vmem>>, vector<1x96xf32>
      %14 = vector.broadcast %13 : vector<1x96xf32> to vector<16x96xf32>
      %15 = arith.addf %12, %14 : vector<16x96xf32>
      %c0_14 = arith.constant 0 : index
      %c0_15 = arith.constant 0 : index
      %16 = vector.load %arg6[%c0_14, %c0_15] : memref<16x96xf32, #tpu.memory_space<vmem>>, vector<16x96xf32>
      tpu.vector_store %arg6[%c0_14, %c0_15], %15 {strides = array<i32>} : memref<16x96xf32, #tpu.memory_space<vmem>>, vector<16x96xf32>,
    } else {
    }
    return
  }
  func.func @transform_0(%arg0: i32, %arg1: i32, %arg2: i32) -> (i32, i32) {
    %c0_i32 = arith.constant 0 : i32
    return %arg0, %arg2 : i32, i32
  }
  func.func @transform_1(%arg0: i32, %arg1: i32, %arg2: i32) -> (i32, i32) {
    %c0_i32 = arith.constant 0 : i32
    return %arg2, %arg1 : i32, i32
  }
  func.func @transform_2(%arg0: i32, %arg1: i32, %arg2: i32) -> (i32, i32) {
    %c0_i32 = arith.constant 0 : i32
    %c0_i32_0 = arith.constant 0 : i32
    return %c0_i32, %arg1 : i32, i32
  }
  func.func @transform_3(%arg0: i32, %arg1: i32, %arg2: i32) -> (i32, i32) {
    %c0_i32 = arith.constant 0 : i32
    return %arg0, %arg1 : i32, i32
  }
}

</mosaic_0001>

<llo_original>
// kernel: tpu_custom_call.1
$region0: #{tpu_custom_call.1}
  #allocation0 [shape = 'u32[]', space=smem, size = 0x4, offset = 0x4, fixed_abs, tag = 'smem constant byte address 0x4 - core index']
  #allocation1 [shape = 'u32[144,128]{1,0:T(1,128)}', space=vmem, size = 0x12000, scoped, tag = 'internal scratch']
  #allocation2 [shape = 'f32[16,96]{1,0:T(8,128)}', space=vmem, size = 0x2000, scoped, tag = 'scratch operand']
  %s0 = inlined_call_operand.hbm [shape: f32[16,32], index: 0, kind: input, shape index: {}]
  %s1 = inlined_call_operand.hbm [shape: f32[32,96], index: 1, kind: input, shape index: {}]
  %s2 = inlined_call_operand.vmem [shape: f32[1,96], index: 2, kind: input, shape index: {}]
  %s3 = inlined_call_operand.hbm [shape: f32[16,96], index: 3, kind: output, shape index: {}]
  %s4 = sld [smem:[#allocation0]]
  $region38: #{tpu_custom_call.1} parent=0
    _
  %s6 = ssub.s32 1, %s4
  %s7 = scalar_select 0, %s6, %s4
  $region1: #{tpu_custom_call.1} parent=0
    #allocation3 [shape = 'u8[8192]{0}', space=vmem, size = 0x2000, scoped, tag = 'input window, operand 0, single buffered']
    #allocation4 [shape = 's32[1]{0}', space=sflag, size = 0x4, scoped, tag = 'scoped memory for tpu_custom_call.1']
    #allocation5 [shape = 's32[1]{0}', space=sflag, size = 0x4, scoped, tag = 'scoped memory for tpu_custom_call.1']
    #allocation6 [shape = 'u8[16384]{0}', space=vmem, size = 0x4000, scoped, tag = 'input window, operand 1, single buffered']
    #allocation7 [shape = 's32[1]{0}', space=sflag, size = 0x4, scoped, tag = 'scoped memory for tpu_custom_call.1']
    #allocation8 [shape = 'u8[8192]{0}', space=vmem, size = 0x2000, scoped, tag = 'output window, operand 0, single buffered']
    %8 = vsyncpa [#allocation4], 0
    %9 = vsyncpa [#allocation7], 0
    %10 = vsyncpa [#allocation5], 0
    // Predicated region
    $region2: #{tpu_custom_call.1} parent=1 // pred_check
      _
    $region3: #{tpu_custom_call.1} parent=1 // pred_check_branch
      %12 = sbr.rel (0) target = $region5
    $region4: #{tpu_custom_call.1} parent=1 // pred_region
      %s14 = ssub.s32 256, 256
      %15 = vsyncadd [#allocation4], %s14
      %s16 = sshll.u32 [#allocation3], 4
      %s17 = int_to_ptr.vmem [resolvable:$true] %s16
      %22 = dma.hbm_to_vmem [thread:$0]  %s0, 256, %s17, [#allocation4], 128, 128, 8
    $region5: #{tpu_custom_call.1} parent=1 // pred_fallthru
      _
    // Predicated region
    $region6: #{tpu_custom_call.1} parent=1 // pred_check
      _
    $region7: #{tpu_custom_call.1} parent=1 // pred_check_branch
      %24 = sbr.rel (0) target = $region9
    $region8: #{tpu_custom_call.1} parent=1 // pred_region
      %s26 = ssub.s32 512, 512
      %27 = vsyncadd [#allocation7], %s26
      %s28 = sshll.u32 [#allocation6], 4
      %s29 = int_to_ptr.vmem [resolvable:$true] %s28
      %34 = dma.hbm_to_vmem [thread:$0]  %s1, 512, %s29, [#allocation7], 128, 128, 8
    $region9: #{tpu_custom_call.1} parent=1 // pred_fallthru
      _
    // Predicated region
    $region10: #{tpu_custom_call.1} parent=1 // pred_check
      _
    $region11: #{tpu_custom_call.1} parent=1 // pred_check_branch
      %36 = sbr.rel (0) target = $region13
    $region12: #{tpu_custom_call.1} parent=1 // pred_region
      _
    $region13: #{tpu_custom_call.1} parent=1 // pred_fallthru
      _
    // Predicated region
    $region14: #{tpu_custom_call.1} parent=1 // pred_check
      _
    $region15: #{tpu_custom_call.1} parent=1 // pred_check_branch
      %38 = sbr.rel (0) target = $region17
    $region16: #{tpu_custom_call.1} parent=1 // pred_region
      %39 = dma.done [#allocation4], 256
    $region17: #{tpu_custom_call.1} parent=1 // pred_fallthru
      _
    // Predicated region
    $region18: #{tpu_custom_call.1} parent=1 // pred_check
      _
    $region19: #{tpu_custom_call.1} parent=1 // pred_check_branch
      %41 = sbr.rel (0) target = $region21
    $region20: #{tpu_custom_call.1} parent=1 // pred_region
      %42 = dma.done [#allocation7], 512
    $region21: #{tpu_custom_call.1} parent=1 // pred_fallthru
      _
    %p43 = scmp.eq.s32.totalorder 0, 0
    // Predicated region
    $region22: #{tpu_custom_call.1} parent=1 // pred_check
      %p44 = pneg %p43
    $region23: #{tpu_custom_call.1} parent=1 // pred_check_branch
      %46 = sbr.rel (%p44) target = $region25
    $region24: #{tpu_custom_call.1} parent=1 // pred_region
      %vm47 = vcmask 785408
      %48 = vst.msk [vmem:[#allocation2] sm:$0xff] %vm47, 0.0
      %49 = vst.msk [vmem:[#allocation2 + $0x8] sm:$0xff] %vm47, 0.0
    $region25: #{tpu_custom_call.1} parent=1 // pred_fallthru
      _
    %v50 = vld [vmem:[#allocation2] sm:$0xff]
    %v51 = vld [vmem:[#allocation2 + $0x8] sm:$0xff]
    %v52 = vld [vmem:[#allocation3] sm:$0xff]
    %v53 = vld [vmem:[#allocation3 + $0x8] sm:$0xff]
    %v54 = vld [vmem:[#allocation6] sm:$0xff]
    %v55 = vld [vmem:[#allocation6 + $0x8] sm:$0xff]
    %v56 = vld [vmem:[#allocation6 + $0x10] sm:$0xff]
    %v57 = vld [vmem:[#allocation6 + $0x18] sm:$0xff]
    %vm58 = vcmask 261120
    %v60 = vsel %vm58, %v52, 0
    %v63 = vsel %vm58, %v53, 0
    %65 = vmatprep.subr.mxu0 0.0
    %66 = vmatpush1.msra.mxu0 %v54
    %67 = vmatprep.subr.mxu0 0.0
    %68 = vmatpush1.msra.mxu0 %v55
    %69 = vmatprep.subr.mxu0 0.0
    %70 = vmatpush1.msra.mxu0 %v56
    %71 = vmatprep.subr.mxu0 0.0
    %72 = vmatpush1.msra.mxu0 %v57
    %73 = vmatprep.subr.mxu0 0.0
    %74 = vmatpush1.msra.mxu0 0.0
    %75 = vmatprep.subr.mxu0 0.0
    %76 = vmatpush1.msra.mxu0 0.0
    %77 = vmatprep.subr.mxu0 0.0
    %78 = vmatpush1.msra.mxu0 0.0
    %79 = vmatprep.subr.mxu0 0.0
    %80 = vmatpush1.msra.mxu0 0.0
    %81 = vmatprep.subr.mxu0 0.0
    %82 = vmatpush1.msra.mxu0 0.0
    %83 = vmatprep.subr.mxu0 0.0
    %84 = vmatpush1.msra.mxu0 0.0
    %85 = vmatprep.subr.mxu0 0.0
    %86 = vmatpush1.msra.mxu0 0.0
    %87 = vmatprep.subr.mxu0 0.0
    %88 = vmatpush1.msra.mxu0 0.0
    %89 = vmatprep.subr.mxu0 0.0
    %90 = vmatpush1.msra.mxu0 0.0
    %91 = vmatprep.subr.mxu0 0.0
    %92 = vmatpush1.msra.mxu0 0.0
    %93 = vmatprep.subr.mxu0 0.0
    %94 = vmatpush1.msra.mxu0 0.0
    %95 = vmatprep.subr.mxu0 0.0
    %96 = vmatpush1.msra.mxu0 0.0
    %97 = vmatprep.subr.mxu0 0.0
    %98 = vmatpush1.msra.mxu0 0.0
    %99 = vmatprep.subr.mxu0 0.0
    %100 = vmatpush1.msra.mxu0 0.0
    %101 = vmatprep.subr.mxu0 0.0
    %102 = vmatpush1.msra.mxu0 0.0
    %103 = vmatprep.subr.mxu0 0.0
    %104 = vmatpush1.msra.mxu0 0.0
    %105 = vmatprep.subr.mxu0 0.0
    %106 = vmatpush1.msra.mxu0 0.0
    %107 = vmatprep.subr.mxu0 0.0
    %108 = vmatpush1.msra.mxu0 0.0
    %109 = vmatprep.subr.mxu0 0.0
    %110 = vmatpush1.msra.mxu0 0.0
    %111 = vmatprep.subr.mxu0 0.0
    %112 = vmatpush1.msra.mxu0 0.0
    %113 = vmatprep.subr.mxu0 0.0
    %114 = vmatpush1.msra.mxu0 0.0
    %115 = vmatprep.subr.mxu0 0.0
    %116 = vmatpush1.msra.mxu0 0.0
    %117 = vmatprep.subr.mxu0 0.0
    %118 = vmatpush1.msra.mxu0 0.0
    %119 = vmatprep.subr.mxu0 0.0
    %120 = vmatpush1.msra.mxu0 0.0
    %121 = vmatprep.subr.mxu0 0.0
    %122 = vmatpush1.msra.mxu0 0.0
    %123 = vmatprep.subr.mxu0 0.0
    %124 = vmatpush1.msra.mxu0 0.0
    %125 = vmatprep.subr.mxu0 0.0
    %126 = vmatpush1.msra.mxu0 0.0
    %127 = vmatprep.subr.mxu0 0.0
    %128 = vmatpush1.msra.mxu0 0.0
    %129 = vmatprep.mubr.f32.mxu0 0.0
    %130 = vmatmul.mubr.f32.gmra.mrb[0].mxu0 %v60
    %v131 = vpop.f32.mrb[0].mxu0
    %v132 = vadd.f32 0.0, %v131
    %v133 = vpop.f32.mrb[0].mxu0
    %134 = vmatprep.mubr.f32.mxu0 0.0
    %135 = vmatmul.mubr.f32.gmra.mrb[0].mxu0 %v63
    %v136 = vpop.f32.mrb[0].mxu0
    %v137 = vadd.f32 0.0, %v136
    %v138 = vpop.f32.mrb[0].mxu0
    %139 = vdwg.mxu0
    %v140 = vadd.f32 %v50, %v132
    %v141 = vadd.f32 %v51, %v137
    %vm142 = vcmask 785408
    %143 = vst.msk [vmem:[#allocation2] sm:$0xff] %vm142, %v140
    %144 = vst.msk [vmem:[#allocation2 + $0x8] sm:$0xff] %vm142, %v141
    // Predicated region
    $region26: #{tpu_custom_call.1} parent=1 // pred_check
      %p145 = pneg %p43
    $region27: #{tpu_custom_call.1} parent=1 // pred_check_branch
      %147 = sbr.rel (%p145) target = $region29
    $region28: #{tpu_custom_call.1} parent=1 // pred_region
      %v148 = vld [vmem:[#allocation2] sm:$0xff]
      %v149 = vld [vmem:[#allocation2 + $0x8] sm:$0xff]
      %v150 = vld [vmem:[%s2] sm:$0x1]
      %v152 = vlaneseq
      %v153 = vshrl.u32 %v152, 7
      %v154 = vsub.s32 0, %v153
      %v155 = vrot.slane %v150, %v154
      %v157 = vadd.f32 %v148, %v155
      %v158 = vadd.f32 %v149, %v155
      %159 = vst.msk [vmem:[#allocation8] sm:$0xff] %vm142, %v157
      %160 = vst.msk [vmem:[#allocation8 + $0x8] sm:$0xff] %vm142, %v158
    $region29: #{tpu_custom_call.1} parent=1 // pred_fallthru
      _
    // Predicated region
    $region30: #{tpu_custom_call.1} parent=1 // pred_check
      _
    $region31: #{tpu_custom_call.1} parent=1 // pred_check_branch
      %162 = sbr.rel (0) target = $region33
    $region32: #{tpu_custom_call.1} parent=1 // pred_region
      %s164 = ssub.s32 256, 256
      %165 = vsyncadd [#allocation5], %s164
      %s166 = sshll.u32 [#allocation8], 4
      %s167 = int_to_ptr.vmem [resolvable:$true] %s166
      %172 = dma.vmem_to_hbm [thread:$0]  %s167, 256, %s3, [#allocation5], 128, 128, 8
    $region33: #{tpu_custom_call.1} parent=1 // pred_fallthru
      _
    // Predicated region
    $region34: #{tpu_custom_call.1} parent=1 // pred_check
      _
    $region35: #{tpu_custom_call.1} parent=1 // pred_check_branch
      %174 = sbr.rel (0) target = $region37
    $region36: #{tpu_custom_call.1} parent=1 // pred_region
      %175 = dma.done [#allocation5], 256
    $region37: #{tpu_custom_call.1} parent=1 // pred_fallthru
      _
    %176 = vsyncpa [#allocation4], 1
    %177 = vsyncpa [#allocation7], 1
    %178 = vsyncpa [#allocation5], 1

</llo_original>
